<compile_context>
chip_gen: v5e
topology: v5e:2x2
jax: 0.10.0
libtpu: 0.0.40
codegen_flags: <defaults>
</compile_context>

<pallas_src>
import functools
import math

import jax
import jax.numpy as jnp
from jax.experimental import pallas as pl
from jax.experimental.pallas import tpu as pltpu

_LANE = 128
_SUBLANE = 8
# Budget for resident W/bias + double-buffered x/out tiles.  Kept below the
# vmem_limit below so every generation (incl. v7x's 64 MiB physical VMEM) fits.
_VMEM_BUDGET_BYTES = 20 << 20
_VMEM_LIMIT_BYTES = 32 << 20


def _round_up(x, m):
    return (x + m - 1) // m * m


def _choose_row_tile(rows, d_in, n_pad, d_out, x_itemsize, w_itemsize,
                     budget_bytes=_VMEM_BUDGET_BYTES):
    """Pick the row tile TM.

    Accounts for the resident (single-buffered) weight/bias first, then sizes
    the double-buffered x / f32-out tiles against the remainder.  No artificial
    row cap -- only the VMEM budget and a ">= 2 grid steps" rule so the v7x
    megacore has independent row tiles for both TensorCores.
    """
    if rows <= _SUBLANE:
        return rows                                   # single full-extent block
    resident = (n_pad * d_in + d_out) * w_itemsize    # W + bias, Buffered(1)
    avail = budget_bytes - resident
    if avail <= 0:
        # TODO(synk): add a K ("arbitrary") grid axis + f32 VMEM accumulator so
        # weights larger than the VMEM budget stream in tiles instead of failing.
        raise ValueError("Weight does not fit the VMEM budget; needs K-tiling.")
    per_row = 2 * (d_in * x_itemsize + d_out * 4)     # dbl-buffered x tile + f32 out tile
    tm = avail // per_row
    # Force >= 2 grid steps whenever the row count allows it (v7x megacore).
    tm = min(tm, max(_SUBLANE, _round_up(pl.cdiv(rows, 2), _SUBLANE)))
    tm = max(_SUBLANE, (tm // _SUBLANE) * _SUBLANE)   # sublane alignment
    return int(min(tm, _round_up(rows, _SUBLANE)))


def _linear_kernel(x_ref, w_ref, b_ref, o_ref, *, d_out, compute_dtype):
    # x_ref: (TM, D_IN) native dtype    w_ref: (D_IN, N_PAD) compute_dtype (pre-cast)
    # b_ref: (1, D_OUT) f32             o_ref: (TM, D_OUT) f32
    x = x_ref[...].astype(compute_dtype)              # fused PyTorch float32 cast
    acc = jnp.dot(x, w_ref[...], preferred_element_type=jnp.float32)  # (TM, N_PAD)
    # Drop the weight's lane-pad columns with a static slice; store only D_OUT
    # lanes so output HBM bytes are not inflated.
    o_ref[...] = acc[:, :d_out] + b_ref[...]


def _linear_rows(x2d, w_t, b2d, d_out, *, row_tile=None):
    """y = x2d @ w_t[:, :d_out] + b2d, f32 accumulate, f32 output.

    x2d: (rows, D_IN) any float dtype (cast fused in-kernel)
    w_t: (D_IN, N_PAD) pre-transposed/pre-cast weight (lane-dense, zero pad cols)
    b2d: (1, D_OUT)   f32 bias
    """
    rows, d_in = x2d.shape
    n_pad = w_t.shape[1]
    compute_dtype = w_t.dtype
    tm = row_tile or _choose_row_tile(rows, d_in, n_pad, d_out,
                                      x2d.dtype.itemsize, w_t.dtype.itemsize)
    grid = (pl.cdiv(rows, tm),)
    kernel = functools.partial(_linear_kernel, d_out=d_out,
                               compute_dtype=compute_dtype)
    return pl.pallas_call(
        kernel,
        out_shape=jax.ShapeDtypeStruct((rows, d_out), jnp.float32),
        grid_spec=pltpu.PrefetchScalarGridSpec(
            num_scalar_prefetch=0,
            grid=grid,
            in_specs=[
                # streamed activation rows (double-buffered by default)
                pl.BlockSpec((tm, d_in), lambda i: (i, 0)),
                # resident weight: constant index_map, single-buffered
                pl.BlockSpec((d_in, n_pad), lambda i: (0, 0),
                             pipeline_mode=pl.Buffered(1)),
                # resident bias: constant index_map, single-buffered
                pl.BlockSpec((1, d_out), lambda i: (0, 0),
                             pipeline_mode=pl.Buffered(1)),
            ],
            out_specs=pl.BlockSpec((tm, d_out), lambda i: (i, 0)),
        ),
        compiler_params=pltpu.CompilerParams(
            # Row tiles are independent -> shard across both TCs on v7x
            # (harmless no-op on single-TC v5e/v6e).
            dimension_semantics=("parallel",),
            vmem_limit_bytes=_VMEM_LIMIT_BYTES,
        ),
    )(x2d, w_t, b2d)


def prepare_linear_params(weight, bias, *, use_bf16_operands=False):
    """One-time weight/bias prep (hoist out of the per-call path).

    weight: (D_OUT, D_IN) PyTorch nn.Linear layout.
    Returns (w_t, b2d): weight transposed to (D_IN, N_PAD) lane-dense layout,
    cast to the compute dtype, zero-padded columns; bias as (1, D_OUT) f32.
    """
    d_out, d_in = weight.shape
    w_dtype = jnp.bfloat16 if use_bf16_operands else jnp.float32
    w_t = jnp.transpose(weight.astype(w_dtype))        # (D_IN, D_OUT)
    n_pad = _round_up(d_out, _LANE)
    if n_pad != d_out:
        w_t = jnp.pad(w_t, ((0, 0), (0, n_pad - d_out)))  # zero pad cols, dropped in-kernel
    b2d = jnp.reshape(bias.astype(jnp.float32), (1, d_out))
    return w_t, b2d


def time_distributed_linear(input_seq, weight, bias, *, use_bf16_operands=False,
                            prepared_params=None):
    """TimeDistributed(nn.Linear) forward.

    input_seq: (B, T, *feat, D_IN), any float dtype
    weight:    (D_OUT, D_IN)  -- PyTorch nn.Linear layout
    bias:      (D_OUT,)
    returns:   (B, T, *feat, D_OUT) float32
    prepared_params: optional output of prepare_linear_params (so the
                     transpose/cast/pad happens once, not per call).
    """
    assert input_seq.ndim > 2
    size = input_seq.shape
    batch_size, time_steps = size[0], size[1]
    feat_dims = size[2:]
    d_in = feat_dims[-1]
    d_out = weight.shape[0]

    # nn.Linear contracts only the last axis -> collapse every other axis
    # (B, T, and any intermediate feature dims) into the row dimension.
    rows = batch_size * time_steps * math.prod(feat_dims[:-1])
    x2d = jnp.reshape(input_seq, (rows, d_in))   # native dtype; f32 cast fused in-kernel

    if prepared_params is None:
        prepared_params = prepare_linear_params(
            weight, bias, use_bf16_operands=use_bf16_operands)
    w_t, b2d = prepared_params

    out2d = _linear_rows(x2d, w_t, b2d, d_out)   # (rows, D_OUT) f32, no pad, no slice
    return jnp.reshape(out2d,
                       (batch_size, time_steps) + feat_dims[:-1] + (d_out,))


if __name__ == "__main__":
    B, T, D_IN, D_OUT = 2, 8, 32, 64

    key = jax.random.PRNGKey(0)
    k_x, k_w, k_b = jax.random.split(key, 3)

    x = jax.random.normal(k_x, (B, T, D_IN), dtype=jnp.float32)
    # deterministic synthetic nn.Linear params (PyTorch layout: (out, in))
    weight = jax.random.normal(k_w, (D_OUT, D_IN), dtype=jnp.float32) * 0.05
    bias = jax.random.normal(k_b, (D_OUT,), dtype=jnp.float32) * 0.01

    # Hoisted one-time weight prep (transpose + cast + lane-pad), then the call.
    params = prepare_linear_params(weight, bias)
    out = time_distributed_linear(x, weight, bias, prepared_params=params)
    out = jax.block_until_ready(out)

    # reference: reshape -> cast f32 -> Linear -> reshape (PyTorch semantics)
    ref = jnp.reshape(
        jnp.reshape(x, (B * T, D_IN)).astype(jnp.float32) @ weight.T + bias,
        (B, T, D_OUT),
    )
    assert out.shape == (B, T, D_OUT)
    assert jnp.allclose(out, ref, atol=1e-5, rtol=1e-5)

    print("KERNEL_OK")
</pallas_src>

<mosaic_0001>
module attributes {stable_mosaic.version = 11 : i64} {
  func.func @_linear_kernel(%arg0: i32, %arg1: memref<8x32xf32, #tpu.memory_space<vmem>>, %arg2: memref<32x128xf32, #tpu.memory_space<vmem>>, %arg3: memref<1x64xf32, #tpu.memory_space<vmem>>, %arg4: memref<8x64xf32, #tpu.memory_space<vmem>>) attributes {dimension_semantics = [#tpu.dimension_semantics<parallel>], iteration_bounds = array<i64: 2>, scalar_prefetch = 0 : i64, scratch_operands = 0 : i64, tpu.core_type = #tpu.core_type<tc>, window_params = [{transform_indices = @transform_0, window_bounds = array<i64: 8, 32>}, {pipeline_mode = #tpu.pipeline_mode<synchronous>, transform_indices = @transform_1, window_bounds = array<i64: 32, 128>}, {pipeline_mode = #tpu.pipeline_mode<synchronous>, transform_indices = @transform_2, window_bounds = array<i64: 1, 64>}, {transform_indices = @transform_3, window_bounds = array<i64: 8, 64>}]} {
    %c0 = arith.constant 0 : index
    %c0_0 = arith.constant 0 : index
    %0 = vector.load %arg1[%c0, %c0_0] : memref<8x32xf32, #tpu.memory_space<vmem>>, vector<8x32xf32>
    %c0_1 = arith.constant 0 : index
    %c0_2 = arith.constant 0 : index
    %1 = vector.load %arg2[%c0_1, %c0_2] : memref<32x128xf32, #tpu.memory_space<vmem>>, vector<32x128xf32>
    %cst = arith.constant dense<0.000000e+00> : vector<8x128xf32>
    %2 = tpu.matmul %0, %1, %cst {dimension_numbers = #tpu.dot_dimension_numbers<[1], [0], [0], [1], [0, 0, 1, 1], [], []>} : vector<8x32xf32>, vector<32x128xf32>, vector<8x128xf32> -> vector<8x128xf32>
    %3 = vector.extract_strided_slice %2 {offsets = [0, 0], sizes = [8, 64], strides = [1, 1]} : vector<8x128xf32> to vector<8x64xf32>
    %c0_3 = arith.constant 0 : index
    %c0_4 = arith.constant 0 : index
    %4 = vector.load %arg3[%c0_3, %c0_4] : memref<1x64xf32, #tpu.memory_space<vmem>>, vector<1x64xf32>
    %5 = vector.broadcast %4 : vector<1x64xf32> to vector<8x64xf32>
    %6 = arith.addf %3, %5 : vector<8x64xf32>
    %c0_5 = arith.constant 0 : index
    %c0_6 = arith.constant 0 : index
    %7 = vector.load %arg4[%c0_5, %c0_6] : memref<8x64xf32, #tpu.memory_space<vmem>>, vector<8x64xf32>
    tpu.vector_store %arg4[%c0_5, %c0_6], %6 {strides = array<i32>} : memref<8x64xf32, #tpu.memory_space<vmem>>, vector<8x64xf32>,
    return
  }
  func.func @transform_0(%arg0: i32) -> (i32, i32) {
    %c0_i32 = arith.constant 0 : i32
    %c0_i32_0 = arith.constant 0 : i32
    return %arg0, %c0_i32 : i32, i32
  }
  func.func @transform_1(%arg0: i32) -> (i32, i32) {
    %c0_i32 = arith.constant 0 : i32
    %c0_i32_0 = arith.constant 0 : i32
    %c0_i32_1 = arith.constant 0 : i32
    return %c0_i32, %c0_i32_0 : i32, i32
  }
  func.func @transform_2(%arg0: i32) -> (i32, i32) {
    %c0_i32 = arith.constant 0 : i32
    %c0_i32_0 = arith.constant 0 : i32
    %c0_i32_1 = arith.constant 0 : i32
    return %c0_i32, %c0_i32_0 : i32, i32
  }
  func.func @transform_3(%arg0: i32) -> (i32, i32) {
    %c0_i32 = arith.constant 0 : i32
    %c0_i32_0 = arith.constant 0 : i32
    return %arg0, %c0_i32 : i32, i32
  }
}

</mosaic_0001>

<llo_original>
// kernel: tpu_custom_call.1
$region0: #{tpu_custom_call.1}
  #allocation0 [shape = 'u32[]', space=smem, size = 0x4, offset = 0x4, fixed_abs, tag = 'smem constant byte address 0x4 - core index']
  #allocation1 [shape = 'u32[72,128]{1,0:T(1,128)}', space=vmem, size = 0x9000, scoped, tag = 'internal scratch']
  %s0 = inlined_call_operand.hbm [shape: f32[16,32], index: 0, kind: input, shape index: {}]
  %s1 = inlined_call_operand.hbm [shape: f32[32,128], index: 1, kind: input, shape index: {}]
  %s2 = inlined_call_operand.vmem [shape: f32[1,64], index: 2, kind: input, shape index: {}]
  %s3 = inlined_call_operand.hbm [shape: f32[16,64], index: 3, kind: output, shape index: {}]
  %s4 = sld [smem:[#allocation0]]
  $region53: #{tpu_custom_call.1} parent=0
    _
  %s6 = ssub.s32 1, %s4
  %s7 = scalar_select 0, %s6, %s4
  $region1: #{tpu_custom_call.1} parent=0
    #allocation2 [shape = 'u8[8192]{0}', space=vmem, size = 0x2000, scoped, tag = 'input window, operand 0']
    #allocation3 [shape = 's32[2]{0}', space=sflag, size = 0x8, scoped, tag = 'scoped memory for tpu_custom_call.1']
    #allocation4 [shape = 's32[2]{0}', space=sflag, size = 0x8, scoped, tag = 'scoped memory for tpu_custom_call.1']
    #allocation5 [shape = 'u8[16384]{0}', space=vmem, size = 0x4000, scoped, tag = 'input window, operand 1, single buffered']
    #allocation6 [shape = 's32[1]{0}', space=sflag, size = 0x4, scoped, tag = 'scoped memory for tpu_custom_call.1']
    #allocation7 [shape = 'u8[8192]{0}', space=vmem, size = 0x2000, scoped, tag = 'output window, operand 0']
    %8 = vsyncpa [#allocation3], 0
    %s9 = scalar_lea.sflag [#allocation3], 1
    %10 = vsyncpa %s9, 0
    %11 = vsyncpa [#allocation6], 0
    %12 = vsyncpa [#allocation4], 0
    %s13 = scalar_lea.sflag [#allocation4], 1
    %14 = vsyncpa %s13, 0
    loop: start=0, step=1, limit=4
    $region2: #{tpu_custom_call.1} parent=1 // loop_pre_header
      _
    $region3: #{tpu_custom_call.1} parent=1 // loop_header
      %s16 = sphi 0, %s20
      %p17 = scmp.ge.s32.totalorder %s16, 4
      %s26 = sphi 0, %s28
      %s29 = sphi 0, %s26
      %s30 = sphi 0, %s29
      %s46 = sphi 0, %s30
      %s50 = sphi 0, %s50
      %s52 = sphi 0, %s50
      %s53 = sphi 0, %s52
      %s67 = sphi 0, %s53
      %s71 = sphi 0, %s71
      %s73 = sphi 0, %s71
      %s74 = sphi 0, %s73
      %s88 = sphi 0, %s74
      %s94 = sphi 0, %s96
      %s97 = sphi 0, %s94
      %s98 = sphi 0, %s97
      %s114 = sphi 0, %s98
    $region4: #{tpu_custom_call.1} parent=1 // loop_header_branch
      %19 = sbr.rel (%p17) target = $region8
    $region5: #{tpu_custom_call.1} parent=1 // loop_body
      %s21 = ssub.s32 %s16, 1
      %s22 = ssub.s32 %s16, 2
      %s23 = sadd.s32 %s16, 1
      %s24 = ssub.s32 %s16, %s23
      %p25 = scmp.eq.s32.totalorder %s24, 0
      %s27 = sadd.s32 %s26, 1
      %s28 = scalar_select %p25, %s26, %s27
      %p31 = pneg %p25
      %p32 = scmp.eq.s32.totalorder %s16, 1
      %p33 = por %p31, %p32
      %p34 = scmp.ne.s32.totalorder %s26, %s29
      %p35 = scmp.eq.s32.totalorder %s16, 0
      %p36 = por %p34, %p35
      %p37 = scmp.ne.s32.totalorder %s26, %s29
      %p38 = scmp.eq.s32.totalorder %s21, 1
      %p39 = por %p37, %p38
      %p40 = scmp.ne.s32.totalorder %s29, %s30
      %p41 = scmp.eq.s32.totalorder %s21, 0
      %p42 = por %p40, %p41
      %p43 = scmp.ne.s32.totalorder %s29, %s30
      %p44 = scmp.eq.s32.totalorder %s22, 1
      %p45 = por %p43, %p44
      %p47 = scmp.ne.s32.totalorder %s30, %s46
      %p48 = scmp.eq.s32.totalorder %s22, 0
      %p49 = por %p47, %p48
      %s51 = sadd.s32 %s50, 1
      %p54 = scmp.eq.s32.totalorder %s16, 1
      %p55 = scmp.ne.s32.totalorder %s50, %s52
      %p56 = scmp.eq.s32.totalorder %s16, 0
      %p57 = por %p55, %p56
      %p58 = scmp.ne.s32.totalorder %s50, %s52
      %p59 = scmp.eq.s32.totalorder %s21, 1
      %p60 = por %p58, %p59
      %p61 = scmp.ne.s32.totalorder %s52, %s53
      %p62 = scmp.eq.s32.totalorder %s21, 0
      %p63 = por %p61, %p62
      %p64 = scmp.ne.s32.totalorder %s52, %s53
      %p65 = scmp.eq.s32.totalorder %s22, 1
      %p66 = por %p64, %p65
      %p68 = scmp.ne.s32.totalorder %s53, %s67
      %p69 = scmp.eq.s32.totalorder %s22, 0
      %p70 = por %p68, %p69
      %s72 = sadd.s32 %s71, 1
      %p75 = scmp.eq.s32.totalorder %s16, 1
      %p76 = scmp.ne.s32.totalorder %s71, %s73
      %p77 = scmp.eq.s32.totalorder %s16, 0
      %p78 = por %p76, %p77
      %p79 = scmp.ne.s32.totalorder %s71, %s73
      %p80 = scmp.eq.s32.totalorder %s21, 1
      %p81 = por %p79, %p80
      %p82 = scmp.ne.s32.totalorder %s73, %s74
      %p83 = scmp.eq.s32.totalorder %s21, 0
      %p84 = por %p82, %p83
      %p85 = scmp.ne.s32.totalorder %s73, %s74
      %p86 = scmp.eq.s32.totalorder %s22, 1
      %p87 = por %p85, %p86
      %p89 = scmp.ne.s32.totalorder %s74, %s88
      %p90 = scmp.eq.s32.totalorder %s22, 0
      %p91 = por %p89, %p90
      %s92 = ssub.s32 %s16, %s23
      %p93 = scmp.eq.s32.totalorder %s92, 0
      %s95 = sadd.s32 %s94, 1
      %s96 = scalar_select %p93, %s94, %s95
      %p99 = pneg %p93
      %p100 = scmp.eq.s32.totalorder %s16, 1
      %p101 = por %p99, %p100
      %p102 = scmp.ne.s32.totalorder %s94, %s97
      %p103 = scmp.eq.s32.totalorder %s16, 0
      %p104 = por %p102, %p103
      %p105 = scmp.ne.s32.totalorder %s94, %s97
      %p106 = scmp.eq.s32.totalorder %s21, 1
      %p107 = por %p105, %p106
      %p108 = scmp.ne.s32.totalorder %s97, %s98
      %p109 = scmp.eq.s32.totalorder %s21, 0
      %p110 = por %p108, %p109
      %p111 = scmp.ne.s32.totalorder %s97, %s98
      %p112 = scmp.eq.s32.totalorder %s22, 1
      %p113 = por %p111, %p112
      %p115 = scmp.ne.s32.totalorder %s98, %s114
      %p116 = scmp.eq.s32.totalorder %s22, 0
      %p117 = por %p115, %p116
      %p118 = scmp.le.s32.totalorder 1, %s16
      %p119 = scmp.lt.s32.totalorder %s16, 3
      %p120 = pnand %p118, %p119
      %p121 = pneg %p120
      // Predicated region
      $region9: #{tpu_custom_call.1} parent=5 // pred_check
        _
      $region10: #{tpu_custom_call.1} parent=5 // pred_check_branch
        %123 = sbr.rel (%p120) target = $region12
      $region11: #{tpu_custom_call.1} parent=5 // pred_region
        %s124 = ssub.s32 %s16, 1
        // Predicated region
        $region13: #{tpu_custom_call.1} parent=11 // pred_check
          %p125 = pneg %p63
        $region14: #{tpu_custom_call.1} parent=11 // pred_check_branch
          %127 = sbr.rel (%p125) target = $region16
        $region15: #{tpu_custom_call.1} parent=11 // pred_region
          %129 = vsyncadd [#allocation6], 0
          %s130 = sshll.u32 %s1, 4
          %s131 = int_to_ptr.hbm [resolvable:$true] %s130
          %s132 = sshll.u32 [#allocation5], 4
          %s133 = int_to_ptr.vmem [resolvable:$true] %s132
          %138 = dma.hbm_to_vmem [thread:$0]  %s131, 512, %s133, [#allocation6], 128, 128, 8
        $region16: #{tpu_custom_call.1} parent=11 // pred_fallthru
          _
        // Predicated region
        $region17: #{tpu_custom_call.1} parent=11 // pred_check
          %p139 = pneg %p84
        $region18: #{tpu_custom_call.1} parent=11 // pred_check_branch
          %141 = sbr.rel (%p139) target = $region20
        $region19: #{tpu_custom_call.1} parent=11 // pred_region
          _
        $region20: #{tpu_custom_call.1} parent=11 // pred_fallthru
          _
      $region12: #{tpu_custom_call.1} parent=5 // pred_fallthru
        _
      %p142 = scmp.lt.s32.totalorder %s16, 2
      // Predicated region
      $region21: #{tpu_custom_call.1} parent=5 // pred_check
        %p143 = pneg %p142
      $region22: #{tpu_custom_call.1} parent=5 // pred_check_branch
        %145 = sbr.rel (%p143) target = $region24
      $region23: #{tpu_custom_call.1} parent=5 // pred_region
        // Predicated region
        $region25: #{tpu_custom_call.1} parent=23 // pred_check
          %p146 = pneg %p36
        $region26: #{tpu_custom_call.1} parent=23 // pred_check_branch
          %148 = sbr.rel (%p146) target = $region28
        $region27: #{tpu_custom_call.1} parent=23 // pred_region
          %s149 = sand.u32 %s26, 1
          %s150 = scalar_lea.sflag [#allocation3], %s149
          %s151 = sand.u32 %s26, 1
          %s152 = smul.addr %s151, 8
          %s153 = scalar_lea.vmem [#allocation2], %s152
          %155 = vsyncadd %s150, 0
          %s156 = smul.addr %s16, 8
          %s157 = scalar_lea.hbm %s0, %s156
          %s159 = sshll.u32 %s157, 4
          %s160 = int_to_ptr.hbm [resolvable:$true] %s159
          %s161 = sshll.u32 %s153, 4
          %s162 = int_to_ptr.vmem [resolvable:$true] %s161
          %164 = dma.hbm_to_vmem [thread:$0]  %s160, 128, %s162, %s150
        $region28: #{tpu_custom_call.1} parent=23 // pred_fallthru
          _
      $region24: #{tpu_custom_call.1} parent=5 // pred_fallthru
        _
      %p165 = scmp.le.s32.totalorder 1, %s16
      %p166 = scmp.lt.s32.totalorder %s16, 3
      %p167 = pnand %p165, %p166
      %p168 = pneg %p167
      // Predicated region
      $region29: #{tpu_custom_call.1} parent=5 // pred_check
        _
      $region30: #{tpu_custom_call.1} parent=5 // pred_check_branch
        %170 = sbr.rel (%p167) target = $region32
      $region31: #{tpu_custom_call.1} parent=5 // pred_region
        %s171 = ssub.s32 %s16, 1
        %s172 = sand.u32 %s29, 1
        %s173 = scalar_lea.sflag [#allocation3], %s172
        %s174 = sand.u32 %s29, 1
        %s175 = smul.addr %s174, 8
        %s176 = scalar_lea.vmem [#allocation2], %s175
        // Predicated region
        $region33: #{tpu_custom_call.1} parent=31 // pred_check
          %p177 = pneg %p42
        $region34: #{tpu_custom_call.1} parent=31 // pred_check_branch
          %179 = sbr.rel (%p177) target = $region36
        $region35: #{tpu_custom_call.1} parent=31 // pred_region
          %181 = dma.done %s173, 128
        $region36: #{tpu_custom_call.1} parent=31 // pred_fallthru
          _
        // Predicated region
        $region37: #{tpu_custom_call.1} parent=31 // pred_check
          %p182 = pneg %p63
        $region38: #{tpu_custom_call.1} parent=31 // pred_check_branch
          %184 = sbr.rel (%p182) target = $region40
        $region39: #{tpu_custom_call.1} parent=31 // pred_region
          %186 = dma.done [#allocation6], 512
        $region40: #{tpu_custom_call.1} parent=31 // pred_fallthru
          _
        %s187 = sand.u32 %s29, 1
        %s188 = scalar_lea.sflag [#allocation3], %s187
        %s189 = sand.u32 %s29, 1
        %s190 = smul.addr %s189, 8
        %s191 = scalar_lea.vmem [#allocation2], %s190
        %p192 = pneg %p42
        %p193 = pneg %p39
        %p194 = pneg %p63
        %p195 = pneg %p60
        %p196 = pneg %p84
        %p197 = pneg %p81
        %p198 = pneg %p110
        %p199 = pneg %p107
        %s200 = sand.u32 %s97, 1
        %s201 = scalar_lea.sflag [#allocation4], %s200
        %s202 = sand.u32 %s97, 1
        %s203 = smul.addr %s202, 8
        %s204 = scalar_lea.vmem [#allocation7], %s203
        %v205 = vld [vmem:[%s176] sm:$0xff]
        %v206 = vld [vmem:[#allocation5] sm:$0xff]
        %v207 = vld [vmem:[#allocation5 + $0x8] sm:$0xff]
        %v208 = vld [vmem:[#allocation5 + $0x10] sm:$0xff]
        %v209 = vld [vmem:[#allocation5 + $0x18] sm:$0xff]
        %vm210 = vcmask 261120
        %v212 = vsel %vm210, %v205, 0
        %214 = vmatpush.msra.mxu0 0.0
        %215 = vmatpush.msra.mxu0 0.0
        %216 = vmatpush.msra.mxu0 0.0
        %217 = vmatpush.msra.mxu0 0.0
        %218 = vmatpush.msra.mxu0 0.0
        %219 = vmatpush.msra.mxu0 0.0
        %220 = vmatpush.msra.mxu0 0.0
        %221 = vmatpush.msra.mxu0 0.0
        %222 = vmatpush.msra.mxu0 0.0
        %223 = vmatpush.msra.mxu0 0.0
        %224 = vmatpush.msra.mxu0 0.0
        %225 = vmatpush.msra.mxu0 0.0
        %226 = vmatpush.msra.mxu0 %v209
        %227 = vmatpush.msra.mxu0 %v208
        %228 = vmatpush.msra.mxu0 %v207
        %229 = vmatpush.msra.mxu0 %v206
        %230 = vmatmul.f32.gmra.mxu0 %v212
        %v231 = vpop.f32.mrf.mxu0
        %v232 = vadd.f32 0.0, %v231
        %233 = vdwg.mxu0
        %v234 = vld [vmem:[%s2] sm:$0x1]
        %v236 = vperm.slane %v234, 0
        %v238 = vadd.f32 %v232, %v236
        %vm239 = vcmask 523264
        %240 = vst.msk [vmem:[%s204] sm:$0xff] %vm239, %v238
        %s241 = sand.u32 %s97, 1
        %s242 = scalar_lea.sflag [#allocation4], %s241
        %s243 = sand.u32 %s97, 1
        %s244 = smul.addr %s243, 8
        %s245 = scalar_lea.vmem [#allocation7], %s244
        // Predicated region
        $region41: #{tpu_custom_call.1} parent=31 // pred_check
          %p246 = pneg %p107
        $region42: #{tpu_custom_call.1} parent=31 // pred_check_branch
          %248 = sbr.rel (%p246) target = $region44
        $region43: #{tpu_custom_call.1} parent=31 // pred_region
          %250 = vsyncadd %s242, 0
          %s251 = smul.addr %s21, 8
          %s252 = scalar_lea.hbm %s3, %s251
          %s254 = sshll.u32 %s245, 4
          %s255 = int_to_ptr.vmem [resolvable:$true] %s254
          %s256 = sshll.u32 %s252, 4
          %s257 = int_to_ptr.hbm [resolvable:$true] %s256
          %259 = dma.vmem_to_hbm [thread:$0]  %s255, 128, %s257, %s242
        $region44: #{tpu_custom_call.1} parent=31 // pred_fallthru
          _
      $region32: #{tpu_custom_call.1} parent=5 // pred_fallthru
        _
      %p260 = scmp.le.s32.totalorder 2, %s16
      // Predicated region
      $region45: #{tpu_custom_call.1} parent=5 // pred_check
        %p261 = pneg %p260
      $region46: #{tpu_custom_call.1} parent=5 // pred_check_branch
        %263 = sbr.rel (%p261) target = $region48
      $region47: #{tpu_custom_call.1} parent=5 // pred_region
        %s264 = ssub.s32 %s16, 2
        // Predicated region
        $region49: #{tpu_custom_call.1} parent=47 // pred_check
          %p265 = pneg %p113
        $region50: #{tpu_custom_call.1} parent=47 // pred_check_branch
          %267 = sbr.rel (%p265) target = $region52
        $region51: #{tpu_custom_call.1} parent=47 // pred_region
          %s268 = sand.u32 %s98, 1
          %s269 = scalar_lea.sflag [#allocation4], %s268
          %s270 = sand.u32 %s98, 1
          %s271 = smul.addr %s270, 8
          %s272 = scalar_lea.vmem [#allocation7], %s271
          %274 = dma.done %s269, 128
        $region52: #{tpu_custom_call.1} parent=47 // pred_fallthru
          _
      $region48: #{tpu_custom_call.1} parent=5 // pred_fallthru
        _
    $region6: #{tpu_custom_call.1} parent=1 // loop_footer
      %s20 = sadd.s32 1, %s16
    $region7: #{tpu_custom_call.1} parent=1 // loop_footer_branch
      %15 = sbr.rel target = $region3
    $region8: #{tpu_custom_call.1} parent=1 // loop_exit
      _
    %275 = vsyncpa [#allocation3], 1
    %s276 = scalar_lea.sflag [#allocation3], 1
    %277 = vsyncpa %s276, 1
    %278 = vsyncpa [#allocation6], 1
    %279 = vsyncpa [#allocation4], 1
    %s280 = scalar_lea.sflag [#allocation4], 1
    %281 = vsyncpa %s280, 1

</llo_original>
